<compile_context>
chip_gen: v6e
topology: v6e:2x2x1
jax: 0.10.0
libtpu: 0.0.40
codegen_flags: <defaults>
</compile_context>

<pallas_src>
import jax
import jax.numpy as jnp
from jax import lax
from jax.experimental import pallas as pl
from jax.experimental.pallas import tpu as pltpu

HIDDEN = 256
M_CHUNK = 128   # rows per inner chunk: keeps h1/h2 in vregs, per-chunk stores


def qnet_kernel(x_ref, w1_ref, b1_ref, w2_ref, b2_ref, w3_ref, b3_ref, o_ref):
    """One batch tile (TB rows) of the QNet MLP, processed in M_CHUNK-row chunks.

    x_ref  : (TB, in_dim)  bf16  -- batch tile of [state, action]
    w1_ref : (in_dim, H)   bf16
    b1_ref : (1, H)        f32
    w2_ref : (H, H)        bf16
    b2_ref : (1, H)        f32
    w3_ref : (1, H)        f32   -- fc3 weight row (PyTorch (1, 256))
    b3_ref : (1, 1)        f32   -- SMEM scalar
    o_ref  : (1, TB)       f32   -- lane-dense (transposed) output tile
    """
    tb = x_ref.shape[0]
    mc = min(M_CHUNK, tb)
    n_chunks = tb // mc

    # Hoist resident weight/bias loads out of the chunk loop.
    w1 = w1_ref[...]
    w2 = w2_ref[...]
    b1 = b1_ref[...]
    b2 = b2_ref[...]
    w3 = w3_ref[...]
    b3 = b3_ref[0, 0]

    def chunk(c, carry):
        r = pl.multiple_of(c * mc, mc)
        xc = x_ref[pl.ds(r, mc), :]

        # fc1 + bias + ReLU, fused straight into the bf16 cast feeding fc2
        # (MXU: bf16 inputs, f32 accumulate).
        h1 = jnp.dot(xc, w1, preferred_element_type=jnp.float32)
        h1 = jnp.maximum(h1 + b1, 0.0).astype(jnp.bfloat16)

        # fc2 + bias + ReLU (result stays f32 for the VPU fc3).
        h2 = jnp.dot(h1, w2, preferred_element_type=jnp.float32)
        h2 = jnp.maximum(h2 + b2, 0.0)

        # fc3 (out_features == 1): VPU multiply + lane reduction instead of a
        # wasted N=1 MXU pass.  Per-chunk 2-D store so the sublane->lane
        # relayout rides under the next chunk's MXU work.
        q = jnp.sum(h2 * w3, axis=-1) + b3
        o_ref[:, pl.ds(r, mc)] = q[None, :]
        return carry

    lax.fori_loop(0, n_chunks, chunk, 0, unroll=True)


def _choose_batch_tile(b, max_tb=2048):
    """Batch-tile heuristic.

    - multiple of 128 (unmasked lane-dense output stores),
    - as large as possible (up to max_tb) to amortize the ~600-cycle/step grid
      overhead -- the MXU has no requirement that M match its tile size,
    - but >= 2 grid tiles whenever the batch permits so the "parallel" batch
      axis gives v7x's second TensorCore work.
    """
    b128 = ((b + 127) // 128) * 128
    if b128 <= 256:
        # Small-batch path: minimum lane-dense tile (128).  For tiny eval
        # batches (B << 128) a pure-JAX fallback would avoid padded-row waste
        # entirely; kept on the Pallas path here to exercise the kernel.
        return 128
    tb = min(max_tb, (b128 // 2) // 128 * 128)
    return max(tb, 128)


def qnet_forward(x, params, *, max_tb=2048):
    """x: (B, state_size + action_size) f32 -> (B, 1) f32."""
    w1, b1, w2, b2, w3, b3 = params
    B, in_dim = x.shape
    H = w1.shape[1]

    tb = _choose_batch_tile(B, max_tb)
    n_tiles = pl.cdiv(B, tb)
    b_pad = n_tiles * tb
    if b_pad != B:
        # Padded rows compute garbage (bias+ReLU on zeros) and are sliced off.
        x = jnp.pad(x, ((0, b_pad - B), (0, 0)))

    # bf16 activations into the kernel (halves x DMA bytes, MXU-native).
    x_bf = x.astype(jnp.bfloat16)

    flops = 2 * b_pad * (in_dim * H + H * H + H)
    bytes_accessed = (x_bf.size * 2 + w1.size * 2 + w2.size * 2
                      + (b1.size + b2.size + w3.size + b3.size) * 4
                      + b_pad * 4)

    out = pl.pallas_call(
        qnet_kernel,
        out_shape=jax.ShapeDtypeStruct((n_tiles, tb), jnp.float32),
        grid=(n_tiles,),
        in_specs=[
            # batch-tiled activations: pipelined / double-buffered
            pl.BlockSpec((tb, in_dim), lambda i: (i, 0)),
            # weights & biases: constant index_map -> resident in VMEM
            pl.BlockSpec((in_dim, H), lambda i: (0, 0)),   # w1
            pl.BlockSpec((1, H), lambda i: (0, 0)),        # b1
            pl.BlockSpec((H, H), lambda i: (0, 0)),        # w2
            pl.BlockSpec((1, H), lambda i: (0, 0)),        # b2
            pl.BlockSpec((1, H), lambda i: (0, 0)),        # w3 row (f32)
            # (1,1) scalar bias: SMEM, no padded VMEM tile / extra DMA
            pl.BlockSpec(memory_space=pltpu.MemorySpace.SMEM),
        ],
        # Lane-dense output: batch along the 128-lane axis -> unmasked stores.
        out_specs=pl.BlockSpec((1, tb), lambda i: (i, 0)),
        # VMEM per step (x tile + out tile, double-buffered, + ~140 KiB of
        # resident weights) stays < 1 MiB even at tb=2048 thanks to
        # M-chunking, so the default scoped-VMEM limit is fine on v5e/v6e/v7x.
        compiler_params=pltpu.CompilerParams(
            dimension_semantics=("parallel",),
        ),
        cost_estimate=pl.CostEstimate(
            flops=flops, transcendentals=0, bytes_accessed=bytes_accessed),
    )(x_bf, w1, b1, w2, b2, w3, b3)

    # (n_tiles, tb) row-major == batch order; back to (B, 1).
    return out.reshape(b_pad, 1)[:B]


def init_qnet_params(key, state_size, action_size, hidden=HIDDEN):
    """PyTorch nn.Linear default init: U(-1/sqrt(fan_in), 1/sqrt(fan_in)).

    Weights are stored as (in_features, out_features) so the kernel computes
    x @ W + b. MXU weights (w1, w2) are kept in bf16; biases and the fc3 row
    (used on the VPU) stay f32.
    """
    in_dim = state_size + action_size

    def linear(k, fan_in, fan_out):
        kw, kb = jax.random.split(k)
        bound = 1.0 / jnp.sqrt(jnp.float32(fan_in))
        w = jax.random.uniform(kw, (fan_in, fan_out), jnp.float32, -bound, bound)
        b = jax.random.uniform(kb, (1, fan_out), jnp.float32, -bound, bound)
        return w, b

    k1, k2, k3 = jax.random.split(key, 3)
    w1, b1 = linear(k1, in_dim, hidden)
    w2, b2 = linear(k2, hidden, hidden)
    w3, b3 = linear(k3, hidden, 1)
    return (w1.astype(jnp.bfloat16), b1,
            w2.astype(jnp.bfloat16), b2,
            w3.reshape(1, hidden),          # fc3 weight as a (1, H) f32 row
            b3.reshape(1, 1))               # fc3 bias as a (1, 1) f32 scalar


def qnet_reference(x, params):
    """Pure-JAX reference emulating the kernel's bf16-in / f32-accumulate math."""
    w1, b1, w2, b2, w3, b3 = params
    h1 = jnp.dot(x.astype(jnp.bfloat16), w1, preferred_element_type=jnp.float32)
    h1 = jnp.maximum(h1 + b1, 0.0)
    h2 = jnp.dot(h1.astype(jnp.bfloat16), w2, preferred_element_type=jnp.float32)
    h2 = jnp.maximum(h2 + b2, 0.0)
    return jnp.sum(h2 * w3, axis=-1, keepdims=True) + b3


def qnet_reference_f32(x, params):
    """Full-f32 reference (sanity check that bf16 error stays small)."""
    w1, b1, w2, b2, w3, b3 = params
    h1 = jnp.maximum(x @ w1.astype(jnp.float32) + b1, 0.0)
    h2 = jnp.maximum(h1 @ w2.astype(jnp.float32) + b2, 0.0)
    return jnp.sum(h2 * w3, axis=-1, keepdims=True) + b3


if __name__ == "__main__":
    state_size = 8
    action_size = 4
    batch = 2

    key = jax.random.PRNGKey(0)
    kp, kx = jax.random.split(key)

    params = init_qnet_params(kp, state_size, action_size)
    # x is the concatenated [state, action] vector the Q-net consumes.
    x = jax.random.normal(kx, (batch, state_size + action_size), jnp.float32)

    out = qnet_forward(x, params)
    out = jax.block_until_ready(out)

    assert out.shape == (batch, 1), out.shape
    ref = qnet_reference(x, params)
    assert jnp.allclose(out, ref, atol=2e-3, rtol=2e-3), (out, ref)
    ref32 = qnet_reference_f32(x, params)
    assert jnp.allclose(out, ref32, atol=5e-2, rtol=5e-2), (out, ref32)

    # Also exercise a multi-tile batch (2 tiles of 128) to cover the grid path.
    xb = jax.random.normal(kx, (300, state_size + action_size), jnp.float32)
    outb = jax.block_until_ready(qnet_forward(xb, params))
    assert outb.shape == (300, 1), outb.shape
    refb = qnet_reference(xb, params)
    assert jnp.allclose(outb, refb, atol=2e-3, rtol=2e-3)

    print("KERNEL_OK")
</pallas_src>

<mosaic_0001>
module attributes {stable_mosaic.version = 11 : i64} {
  func.func @qnet_kernel(%arg0: i32, %arg1: memref<128x12xbf16, #tpu.memory_space<vmem>>, %arg2: memref<12x256xbf16, #tpu.memory_space<vmem>>, %arg3: memref<1x256xf32, #tpu.memory_space<vmem>>, %arg4: memref<256x256xbf16, #tpu.memory_space<vmem>>, %arg5: memref<1x256xf32, #tpu.memory_space<vmem>>, %arg6: memref<1x256xf32, #tpu.memory_space<vmem>>, %arg7: memref<1x1xf32, #tpu.memory_space<smem>>, %arg8: memref<1x128xf32, #tpu.memory_space<vmem>>) attributes {dimension_semantics = [#tpu.dimension_semantics<parallel>], iteration_bounds = array<i64: 1>, scalar_prefetch = 0 : i64, scratch_operands = 0 : i64, tpu.core_type = #tpu.core_type<tc>, window_params = [{transform_indices = @transform_0, window_bounds = array<i64: 128, 12>}, {pipeline_mode = #tpu.pipeline_mode<synchronous>, transform_indices = @transform_1, window_bounds = array<i64: 12, 256>}, {pipeline_mode = #tpu.pipeline_mode<synchronous>, transform_indices = @transform_2, window_bounds = array<i64: 1, 256>}, {pipeline_mode = #tpu.pipeline_mode<synchronous>, transform_indices = @transform_3, window_bounds = array<i64: 256, 256>}, {pipeline_mode = #tpu.pipeline_mode<synchronous>, transform_indices = @transform_4, window_bounds = array<i64: 1, 256>}, {pipeline_mode = #tpu.pipeline_mode<synchronous>, transform_indices = @transform_5, window_bounds = array<i64: 1, 256>}, {transform_indices = @transform_6, window_bounds = array<i64: 1, 1>}, {transform_indices = @transform_7, window_bounds = array<i64: 1, 128>}]} {
    %c0 = arith.constant 0 : index
    %c0_0 = arith.constant 0 : index
    %0 = vector.load %arg2[%c0, %c0_0] : memref<12x256xbf16, #tpu.memory_space<vmem>>, vector<12x256xbf16>
    %c0_1 = arith.constant 0 : index
    %c0_2 = arith.constant 0 : index
    %1 = vector.load %arg4[%c0_1, %c0_2] : memref<256x256xbf16, #tpu.memory_space<vmem>>, vector<256x256xbf16>
    %c0_3 = arith.constant 0 : index
    %c0_4 = arith.constant 0 : index
    %2 = vector.load %arg3[%c0_3, %c0_4] : memref<1x256xf32, #tpu.memory_space<vmem>>, vector<1x256xf32>
    %c0_5 = arith.constant 0 : index
    %c0_6 = arith.constant 0 : index
    %3 = vector.load %arg5[%c0_5, %c0_6] : memref<1x256xf32, #tpu.memory_space<vmem>>, vector<1x256xf32>
    %c0_7 = arith.constant 0 : index
    %c0_8 = arith.constant 0 : index
    %4 = vector.load %arg6[%c0_7, %c0_8] : memref<1x256xf32, #tpu.memory_space<vmem>>, vector<1x256xf32>
    %c0_9 = arith.constant 0 : index
    %c0_10 = arith.constant 0 : index
    %5 = memref.load %arg7[%c0_9, %c0_10] : memref<1x1xf32, #tpu.memory_space<smem>>
    %c0_i32 = arith.constant 0 : i32
    %c128_i32 = arith.constant 128 : i32
    %6 = arith.muli %c0_i32, %c128_i32 : i32
    %7 = tpu.assume_multiple %6, 128 : i32
    %8 = arith.index_cast %7 : i32 to index
    %c0_11 = arith.constant 0 : index
    %9 = vector.load %arg1[%8, %c0_11] : memref<128x12xbf16, #tpu.memory_space<vmem>>, vector<128x12xbf16>
    %cst = arith.constant dense<0.000000e+00> : vector<128x256xf32>
    %10 = tpu.matmul %9, %0, %cst {dimension_numbers = #tpu.dot_dimension_numbers<[1], [0], [0], [1], [0, 0, 1, 1], [], []>} : vector<128x12xbf16>, vector<12x256xbf16>, vector<128x256xf32> -> vector<128x256xf32>
    %11 = vector.broadcast %2 : vector<1x256xf32> to vector<128x256xf32>
    %12 = arith.addf %10, %11 : vector<128x256xf32>
    %cst_12 = arith.constant 0.000000e+00 : f32
    %13 = vector.broadcast %cst_12 : f32 to vector<128x256xf32>
    %14 = arith.maximumf %12, %13 : vector<128x256xf32>
    %15 = arith.truncf %14 : vector<128x256xf32> to vector<128x256xbf16>
    %cst_13 = arith.constant dense<0.000000e+00> : vector<128x256xf32>
    %16 = tpu.matmul %15, %1, %cst_13 {dimension_numbers = #tpu.dot_dimension_numbers<[1], [0], [0], [1], [0, 0, 1, 1], [], []>} : vector<128x256xbf16>, vector<256x256xbf16>, vector<128x256xf32> -> vector<128x256xf32>
    %17 = vector.broadcast %3 : vector<1x256xf32> to vector<128x256xf32>
    %18 = arith.addf %16, %17 : vector<128x256xf32>
    %cst_14 = arith.constant 0.000000e+00 : f32
    %19 = vector.broadcast %cst_14 : f32 to vector<128x256xf32>
    %20 = arith.maximumf %18, %19 : vector<128x256xf32>
    %21 = vector.broadcast %4 : vector<1x256xf32> to vector<128x256xf32>
    %22 = arith.mulf %20, %21 : vector<128x256xf32>
    %cst_15 = arith.constant dense<0.000000e+00> : vector<128xf32>
    %23 = vector.multi_reduction <add>, %22, %cst_15 [1] : vector<128x256xf32> to vector<128xf32>
    %24 = vector.broadcast %5 : f32 to vector<128xf32>
    %25 = arith.addf %23, %24 : vector<128xf32>
    %26 = vector.shape_cast %25 : vector<128xf32> to vector<1x128xf32>
    %c0_16 = arith.constant 0 : index
    %27 = arith.index_cast %7 : i32 to index
    %28 = vector.load %arg8[%c0_16, %27] : memref<1x128xf32, #tpu.memory_space<vmem>>, vector<1x128xf32>
    tpu.vector_store %arg8[%c0_16, %27], %26 {strides = array<i32>} : memref<1x128xf32, #tpu.memory_space<vmem>>, vector<1x128xf32>,
    %c1_i32 = arith.constant 1 : i32
    return
  }
  func.func @transform_0(%arg0: i32) -> (i32, i32) {
    %c0_i32 = arith.constant 0 : i32
    %c0_i32_0 = arith.constant 0 : i32
    return %arg0, %c0_i32 : i32, i32
  }
  func.func @transform_1(%arg0: i32) -> (i32, i32) {
    %c0_i32 = arith.constant 0 : i32
    %c0_i32_0 = arith.constant 0 : i32
    %c0_i32_1 = arith.constant 0 : i32
    return %c0_i32, %c0_i32_0 : i32, i32
  }
  func.func @transform_2(%arg0: i32) -> (i32, i32) {
    %c0_i32 = arith.constant 0 : i32
    %c0_i32_0 = arith.constant 0 : i32
    %c0_i32_1 = arith.constant 0 : i32
    return %c0_i32, %c0_i32_0 : i32, i32
  }
  func.func @transform_3(%arg0: i32) -> (i32, i32) {
    %c0_i32 = arith.constant 0 : i32
    %c0_i32_0 = arith.constant 0 : i32
    %c0_i32_1 = arith.constant 0 : i32
    return %c0_i32, %c0_i32_0 : i32, i32
  }
  func.func @transform_4(%arg0: i32) -> (i32, i32) {
    %c0_i32 = arith.constant 0 : i32
    %c0_i32_0 = arith.constant 0 : i32
    %c0_i32_1 = arith.constant 0 : i32
    return %c0_i32, %c0_i32_0 : i32, i32
  }
  func.func @transform_5(%arg0: i32) -> (i32, i32) {
    %c0_i32 = arith.constant 0 : i32
    %c0_i32_0 = arith.constant 0 : i32
    %c0_i32_1 = arith.constant 0 : i32
    return %c0_i32, %c0_i32_0 : i32, i32
  }
  func.func @transform_6(%arg0: i32) -> (i32, i32) {
    %c0_i32 = arith.constant 0 : i32
    %c0_i32_0 = arith.constant 0 : i32
    %c0_i32_1 = arith.constant 0 : i32
    return %c0_i32, %c0_i32_0 : i32, i32
  }
  func.func @transform_7(%arg0: i32) -> (i32, i32) {
    %c0_i32 = arith.constant 0 : i32
    %c0_i32_0 = arith.constant 0 : i32
    return %arg0, %c0_i32 : i32, i32
  }
}

</mosaic_0001>

<llo_original>
// kernel: tpu_custom_call.1
$region0: #{tpu_custom_call.1}
  #allocation0 [shape = 'u32[]', space=smem, size = 0x4, offset = 0x4, fixed_abs, tag = 'smem constant byte address 0x4 - core index']
  #allocation1 [shape = 'u32[144,128]{1,0:T(1,128)}', space=vmem, size = 0x12000, scoped, tag = 'internal scratch']
  #allocation2 [shape = 'f32[1,1]{1,0:T(1,128)S(6)}', space=smem, size = 0x200, scoped, tag = 'scoped memory for tpu_custom_call.1']
  %s0 = inlined_call_operand.vmem [shape: bf16[128,12], index: 0, kind: input, shape index: {}]
  %s1 = inlined_call_operand.vmem [shape: bf16[12,256], index: 1, kind: input, shape index: {}]
  %s2 = inlined_call_operand.vmem [shape: f32[1,256], index: 2, kind: input, shape index: {}]
  %s3 = inlined_call_operand.hbm [shape: bf16[256,256], index: 3, kind: input, shape index: {}]
  %s4 = inlined_call_operand.vmem [shape: f32[1,256], index: 4, kind: input, shape index: {}]
  %s5 = inlined_call_operand.vmem [shape: f32[1,256], index: 5, kind: input, shape index: {}]
  %s6 = inlined_call_operand.<no memory space> [shape: f32[1,1], index: 6, kind: input, shape index: {}]
  %s7 = inlined_call_operand.hbm [shape: f32[1,128], index: 7, kind: output, shape index: {}]
  %s8 = sld [smem:[#allocation0]]
  $region42: #{tpu_custom_call.1} parent=0
    _
  %s10 = ssub.s32 1, %s8
  %s11 = scalar_select 0, %s10, %s8
  %12 = sst [smem:[#allocation2]] %s6
  $region1: #{tpu_custom_call.1} parent=0
    #allocation3 [shape = 'u8[131072]{0}', space=vmem, size = 0x20000, scoped, tag = 'input window, operand 3, single buffered']
    #allocation4 [shape = 's32[1]{0}', space=sflag, size = 0x4, scoped, tag = 'scoped memory for tpu_custom_call.1']
    #allocation5 [shape = 's32[1]{0}', space=sflag, size = 0x4, scoped, tag = 'scoped memory for tpu_custom_call.1']
    #allocation6 [shape = 'u8[512]{0}', space=vmem, size = 0x400, scoped, tag = 'output window, operand 0, single buffered']
    %13 = vsyncpa [#allocation4], 0
    %14 = vsyncpa [#allocation5], 0
    // Predicated region
    $region2: #{tpu_custom_call.1} parent=1 // pred_check
      _
    $region3: #{tpu_custom_call.1} parent=1 // pred_check_branch
      %16 = sbr.rel (0) target = $region5
    $region4: #{tpu_custom_call.1} parent=1 // pred_region
      _
    $region5: #{tpu_custom_call.1} parent=1 // pred_fallthru
      _
    // Predicated region
    $region6: #{tpu_custom_call.1} parent=1 // pred_check
      _
    $region7: #{tpu_custom_call.1} parent=1 // pred_check_branch
      %18 = sbr.rel (0) target = $region9
    $region8: #{tpu_custom_call.1} parent=1 // pred_region
      _
    $region9: #{tpu_custom_call.1} parent=1 // pred_fallthru
      _
    // Predicated region
    $region10: #{tpu_custom_call.1} parent=1 // pred_check
      _
    $region11: #{tpu_custom_call.1} parent=1 // pred_check_branch
      %20 = sbr.rel (0) target = $region13
    $region12: #{tpu_custom_call.1} parent=1 // pred_region
      _
    $region13: #{tpu_custom_call.1} parent=1 // pred_fallthru
      _
    // Predicated region
    $region14: #{tpu_custom_call.1} parent=1 // pred_check
      _
    $region15: #{tpu_custom_call.1} parent=1 // pred_check_branch
      %22 = sbr.rel (0) target = $region17
    $region16: #{tpu_custom_call.1} parent=1 // pred_region
      %s24 = ssub.s32 4096, 4096
      %25 = vsyncadd [#allocation4], %s24
      %s26 = sshll.u32 [#allocation3], 4
      %s27 = int_to_ptr.vmem [resolvable:$true] %s26
      %32 = dma.hbm_to_vmem [thread:$0]  %s3, 4096, %s27, [#allocation4], 128, 128, 8
    $region17: #{tpu_custom_call.1} parent=1 // pred_fallthru
      _
    // Predicated region
    $region18: #{tpu_custom_call.1} parent=1 // pred_check
      _
    $region19: #{tpu_custom_call.1} parent=1 // pred_check_branch
      %34 = sbr.rel (0) target = $region21
    $region20: #{tpu_custom_call.1} parent=1 // pred_region
      _
    $region21: #{tpu_custom_call.1} parent=1 // pred_fallthru
      _
    // Predicated region
    $region22: #{tpu_custom_call.1} parent=1 // pred_check
      _
    $region23: #{tpu_custom_call.1} parent=1 // pred_check_branch
      %36 = sbr.rel (0) target = $region25
    $region24: #{tpu_custom_call.1} parent=1 // pred_region
      _
    $region25: #{tpu_custom_call.1} parent=1 // pred_fallthru
      _
    // Predicated region
    $region26: #{tpu_custom_call.1} parent=1 // pred_check
      _
    $region27: #{tpu_custom_call.1} parent=1 // pred_check_branch
      %38 = sbr.rel (0) target = $region29
    $region28: #{tpu_custom_call.1} parent=1 // pred_region
      _
    $region29: #{tpu_custom_call.1} parent=1 // pred_fallthru
      _
    // Predicated region
    $region30: #{tpu_custom_call.1} parent=1 // pred_check
      _
    $region31: #{tpu_custom_call.1} parent=1 // pred_check_branch
      %40 = sbr.rel (0) target = $region33
    $region32: #{tpu_custom_call.1} parent=1 // pred_region
      %41 = dma.done [#allocation4], 4096
    $region33: #{tpu_custom_call.1} parent=1 // pred_fallthru
      _
    %v43 = vld [vmem:[%s1] sm:$0xff]
    %v44 = vld [vmem:[%s1 + $0x8] sm:$0x33]
    %v45 = vld [vmem:[#allocation3] sm:$0xff]
    %v46 = vld [vmem:[#allocation3 + $0x8] sm:$0xff]
    %v47 = vld [vmem:[#allocation3 + $0x10] sm:$0xff]
    %v48 = vld [vmem:[#allocation3 + $0x18] sm:$0xff]
    %v49 = vld [vmem:[#allocation3 + $0x20] sm:$0xff]
    %v50 = vld [vmem:[#allocation3 + $0x28] sm:$0xff]
    %v51 = vld [vmem:[#allocation3 + $0x30] sm:$0xff]
    %v52 = vld [vmem:[#allocation3 + $0x38] sm:$0xff]
    %v53 = vld [vmem:[#allocation3 + $0x40] sm:$0xff]
    %v54 = vld [vmem:[#allocation3 + $0x48] sm:$0xff]
    %v55 = vld [vmem:[#allocation3 + $0x50] sm:$0xff]
    %v56 = vld [vmem:[#allocation3 + $0x58] sm:$0xff]
    %v57 = vld [vmem:[#allocation3 + $0x60] sm:$0xff]
    %v58 = vld [vmem:[#allocation3 + $0x68] sm:$0xff]
    %v59 = vld [vmem:[#allocation3 + $0x70] sm:$0xff]
    %v60 = vld [vmem:[#allocation3 + $0x78] sm:$0xff]
    %v61 = vld [vmem:[#allocation3 + $0x80] sm:$0xff]
    %v62 = vld [vmem:[#allocation3 + $0x88] sm:$0xff]
    %v63 = vld [vmem:[#allocation3 + $0x90] sm:$0xff]
    %v64 = vld [vmem:[#allocation3 + $0x98] sm:$0xff]
    %v65 = vld [vmem:[#allocation3 + $0xa0] sm:$0xff]
    %v66 = vld [vmem:[#allocation3 + $0xa8] sm:$0xff]
    %v67 = vld [vmem:[#allocation3 + $0xb0] sm:$0xff]
    %v68 = vld [vmem:[#allocation3 + $0xb8] sm:$0xff]
    %v69 = vld [vmem:[#allocation3 + $0xc0] sm:$0xff]
    %v70 = vld [vmem:[#allocation3 + $0xc8] sm:$0xff]
    %v71 = vld [vmem:[#allocation3 + $0xd0] sm:$0xff]
    %v72 = vld [vmem:[#allocation3 + $0xd8] sm:$0xff]
    %v73 = vld [vmem:[#allocation3 + $0xe0] sm:$0xff]
    %v74 = vld [vmem:[#allocation3 + $0xe8] sm:$0xff]
    %v75 = vld [vmem:[#allocation3 + $0xf0] sm:$0xff]
    %v76 = vld [vmem:[#allocation3 + $0xf8] sm:$0xff]
    %v77 = vld [vmem:[%s2] sm:$0x3]
    %v78 = vld [vmem:[%s4] sm:$0x3]
    %v79 = vld [vmem:[%s5] sm:$0x3]
    %s80 = sld [smem:[#allocation2]]
    %v81 = vld [vmem:[%s0] sm:$0xf]
    %v82 = vld [vmem:[%s0 + $0x4] sm:$0xf]
    %v83 = vld [vmem:[%s0 + $0x8] sm:$0xf]
    %v84 = vld [vmem:[%s0 + $0xc] sm:$0xf]
    %v85 = vld [vmem:[%s0 + $0x10] sm:$0xf]
    %v86 = vld [vmem:[%s0 + $0x14] sm:$0xf]
    %v87 = vld [vmem:[%s0 + $0x18] sm:$0xf]
    %v88 = vld [vmem:[%s0 + $0x1c] sm:$0xf]
    %v89 = vld [vmem:[%s0 + $0x20] sm:$0xf]
    %v90 = vld [vmem:[%s0 + $0x24] sm:$0xf]
    %v91 = vld [vmem:[%s0 + $0x28] sm:$0xf]
    %v92 = vld [vmem:[%s0 + $0x2c] sm:$0xf]
    %v93 = vld [vmem:[%s0 + $0x30] sm:$0xf]
    %v94 = vld [vmem:[%s0 + $0x34] sm:$0xf]
    %v95 = vld [vmem:[%s0 + $0x38] sm:$0xf]
    %v96 = vld [vmem:[%s0 + $0x3c] sm:$0xf]
    %v98 = vlaneseq
    %v99 = vshrl.u32 %v98, 7
    %v100 = vsub.s32 0, %v99
    %v101 = vrot.slane %v77, %v100
    %v102 = vlaneseq
    %v103 = vshrl.u32 %v102, 7
    %v104 = vsub.s32 1, %v103
    %v105 = vrot.slane %v77, %v104
    %v124 = vunpack.c.l.b16 %v81
    %v125 = vunpack.c.l.b16 %v82
    %v126 = vunpack.c.l.b16 %v83
    %v127 = vunpack.c.l.b16 %v84
    %v128 = vunpack.c.l.b16 %v85
    %v129 = vunpack.c.l.b16 %v86
    %v130 = vunpack.c.l.b16 %v87
    %v131 = vunpack.c.l.b16 %v88
    %v132 = vunpack.c.l.b16 %v89
    %v133 = vunpack.c.l.b16 %v90
    %v134 = vunpack.c.l.b16 %v91
    %v135 = vunpack.c.l.b16 %v92
    %v136 = vunpack.c.l.b16 %v93
    %v137 = vunpack.c.l.b16 %v94
    %v138 = vunpack.c.l.b16 %v95
    %v139 = vunpack.c.l.b16 %v96
    %v140 = vpack.c.b16 %v125, %v124
    %v141 = vpack.c.b16 %v127, %v126
    %v142 = vpack.c.b16 %v129, %v128
    %v143 = vpack.c.b16 %v131, %v130
    %v144 = vpack.c.b16 %v133, %v132
    %v145 = vpack.c.b16 %v135, %v134
    %v146 = vpack.c.b16 %v137, %v136
    %v147 = vpack.c.b16 %v139, %v138
    %v150 = vunpack.c.l.b16 %v43
    %v151 = vunpack.c.h.b16 %v43
    %v152 = vunpack.c.l.b16 %v44
    %v153 = vunpack.c.h.b16 %v44
    %v154 = vpack.c.b16 %v152, %v150
    %v155 = vpack.c.b16 %v153, %v151
    %vm156 = vcmask 97280
    %v158 = vsel %vm156, %v140, 0
    %v161 = vsel %vm156, %v141, 0
    %v164 = vsel %vm156, %v142, 0
    %v167 = vsel %vm156, %v143, 0
    %v170 = vsel %vm156, %v144, 0
    %v173 = vsel %vm156, %v145, 0
    %v176 = vsel %vm156, %v146, 0
    %v179 = vsel %vm156, %v147, 0
    %vm181 = vcmask 1045504
    %v183 = vsel %vm181, %v154, 0
    %v186 = vsel %vm181, %v155, 0
    %188 = vmatprep.subr.bf16.mxu0 0
    %189 = vmatpush1.bf16.msra.mxu0 0
    %190 = vmatprep.subr.bf16.mxu0 0
    %191 = vmatpush1.bf16.msra.mxu0 0
    %192 = vmatprep.subr.bf16.mxu0 0
    %193 = vmatpush1.bf16.msra.mxu0 0
    %194 = vmatprep.subr.bf16.mxu0 0
    %195 = vmatpush1.bf16.msra.mxu0 0
    %196 = vmatprep.subr.bf16.mxu0 0
    %197 = vmatpush1.bf16.msra.mxu0 0
    %198 = vmatprep.subr.bf16.mxu0 0
    %199 = vmatpush1.bf16.msra.mxu0 0
    %200 = vmatprep.subr.bf16.mxu0 0
    %201 = vmatpush1.bf16.msra.mxu0 0
    %202 = vmatprep.subr.bf16.mxu0 %v186
    %203 = vmatpush1.bf16.msra.mxu0 %v183
    %204 = vmatprep.subr.bf16.mxu0 0
    %205 = vmatpush2.bf16.msra.mxu0 0
    %206 = vmatprep.subr.bf16.mxu0 0
    %207 = vmatpush2.bf16.msra.mxu0 0
    %208 = vmatprep.subr.bf16.mxu0 0
    %209 = vmatpush2.bf16.msra.mxu0 0
    %210 = vmatprep.subr.bf16.mxu0 0
    %211 = vmatpush2.bf16.msra.mxu0 0
    %212 = vmatprep.subr.bf16.mxu0 0
    %213 = vmatpush2.bf16.msra.mxu0 0
    %214 = vmatprep.subr.bf16.mxu0 0
    %215 = vmatpush2.bf16.msra.mxu0 0
    %216 = vmatprep.subr.bf16.mxu0 0
    %217 = vmatpush2.bf16.msra.mxu0 0
    %218 = vmatprep.subr.bf16.mxu0 0
    %219 = vmatpush2.bf16.msra.mxu0 0
    %220 = vmatprep.mubr.bf16.mxu0 0
    %221 = vmatmul.mubr.bf16.gmra.mxu0 %v158
    %v222 = vpop.f32.mrf.mxu0
    %v223 = vadd.f32 %v101, %v222
    %v224 = vpop.f32.mrf.mxu0
    %v225 = vadd.f32 %v105, %v224
    %v226 = vpop.f32.mrf.mxu0
    %v227 = vadd.f32 %v101, %v226
    %v228 = vpop.f32.mrf.mxu0
    %v229 = vadd.f32 %v105, %v228
    %230 = vmatprep.mubr.bf16.mxu0 0
    %231 = vmatmul.mubr.bf16.gmra.mxu0 %v161
    %v232 = vpop.f32.mrf.mxu0
    %v233 = vadd.f32 %v101, %v232
    %v234 = vpop.f32.mrf.mxu0
    %v235 = vadd.f32 %v105, %v234
    %v236 = vpop.f32.mrf.mxu0
    %v237 = vadd.f32 %v101, %v236
    %v238 = vpop.f32.mrf.mxu0
    %v239 = vadd.f32 %v105, %v238
    %240 = vmatprep.mubr.bf16.mxu0 0
    %241 = vmatmul.mubr.bf16.gmra.mxu0 %v164
    %v242 = vpop.f32.mrf.mxu0
    %v243 = vadd.f32 %v101, %v242
    %v244 = vpop.f32.mrf.mxu0
    %v245 = vadd.f32 %v105, %v244
    %v246 = vpop.f32.mrf.mxu0
    %v247 = vadd.f32 %v101, %v246
    %v248 = vpop.f32.mrf.mxu0
    %v249 = vadd.f32 %v105, %v248
    %250 = vmatprep.mubr.bf16.mxu0 0
    %251 = vmatmul.mubr.bf16.gmra.mxu0 %v167
    %v252 = vpop.f32.mrf.mxu0
    %v253 = vadd.f32 %v101, %v252
    %v254 = vpop.f32.mrf.mxu0
    %v255 = vadd.f32 %v105, %v254
    %v256 = vpop.f32.mrf.mxu0
    %v257 = vadd.f32 %v101, %v256
    %v258 = vpop.f32.mrf.mxu0
    %v259 = vadd.f32 %v105, %v258
    %260 = vmatprep.mubr.bf16.mxu0 0
    %261 = vmatmul.mubr.bf16.gmra.mxu0 %v170
    %v262 = vpop.f32.mrf.mxu0
    %v263 = vadd.f32 %v101, %v262
    %v264 = vpop.f32.mrf.mxu0
    %v265 = vadd.f32 %v105, %v264
    %v266 = vpop.f32.mrf.mxu0
    %v267 = vadd.f32 %v101, %v266
    %v268 = vpop.f32.mrf.mxu0
    %v269 = vadd.f32 %v105, %v268
    %270 = vmatprep.mubr.bf16.mxu0 0
    %271 = vmatmul.mubr.bf16.gmra.mxu0 %v173
    %v272 = vpop.f32.mrf.mxu0
    %v273 = vadd.f32 %v101, %v272
    %v274 = vpop.f32.mrf.mxu0
    %v275 = vadd.f32 %v105, %v274
    %v276 = vpop.f32.mrf.mxu0
    %v277 = vadd.f32 %v101, %v276
    %v278 = vpop.f32.mrf.mxu0
    %v279 = vadd.f32 %v105, %v278
    %280 = vmatprep.mubr.bf16.mxu0 0
    %281 = vmatmul.mubr.bf16.gmra.mxu0 %v176
    %v282 = vpop.f32.mrf.mxu0
    %v283 = vadd.f32 %v101, %v282
    %v284 = vpop.f32.mrf.mxu0
    %v285 = vadd.f32 %v105, %v284
    %v286 = vpop.f32.mrf.mxu0
    %v287 = vadd.f32 %v101, %v286
    %v288 = vpop.f32.mrf.mxu0
    %v289 = vadd.f32 %v105, %v288
    %290 = vmatprep.mubr.bf16.mxu0 0
    %291 = vmatmul.mubr.bf16.gmra.mxu0 %v179
    %v292 = vpop.f32.mrf.mxu0
    %v293 = vadd.f32 %v101, %v292
    %v294 = vpop.f32.mrf.mxu0
    %v295 = vadd.f32 %v105, %v294
    %v296 = vpop.f32.mrf.mxu0
    %v297 = vadd.f32 %v101, %v296
    %v298 = vpop.f32.mrf.mxu0
    %v299 = vadd.f32 %v105, %v298
    %300 = vdwg.mxu0
    %v301 = vmax.f32 %v223, 0.0
    %v302 = vmax.f32 %v225, 0.0
    %v303 = vmax.f32 %v227, 0.0
    %v304 = vmax.f32 %v229, 0.0
    %v305 = vmax.f32 %v233, 0.0
    %v306 = vmax.f32 %v235, 0.0
    %v307 = vmax.f32 %v237, 0.0
    %v308 = vmax.f32 %v239, 0.0
    %v309 = vmax.f32 %v243, 0.0
    %v310 = vmax.f32 %v245, 0.0
    %v311 = vmax.f32 %v247, 0.0
    %v312 = vmax.f32 %v249, 0.0
    %v313 = vmax.f32 %v253, 0.0
    %v314 = vmax.f32 %v255, 0.0
    %v315 = vmax.f32 %v257, 0.0
    %v316 = vmax.f32 %v259, 0.0
    %v317 = vmax.f32 %v263, 0.0
    %v318 = vmax.f32 %v265, 0.0
    %v319 = vmax.f32 %v267, 0.0
    %v320 = vmax.f32 %v269, 0.0
    %v321 = vmax.f32 %v273, 0.0
    %v322 = vmax.f32 %v275, 0.0
    %v323 = vmax.f32 %v277, 0.0
    %v324 = vmax.f32 %v279, 0.0
    %v325 = vmax.f32 %v283, 0.0
    %v326 = vmax.f32 %v285, 0.0
    %v327 = vmax.f32 %v287, 0.0
    %v328 = vmax.f32 %v289, 0.0
    %v329 = vmax.f32 %v293, 0.0
    %v330 = vmax.f32 %v295, 0.0
    %v331 = vmax.f32 %v297, 0.0
    %v332 = vmax.f32 %v299, 0.0
    %v333 = vpack.c.bf16 %v303, %v301
    %v334 = vpack.c.bf16 %v304, %v302
    %v335 = vpack.c.bf16 %v307, %v305
    %v336 = vpack.c.bf16 %v308, %v306
    %v337 = vpack.c.bf16 %v311, %v309
    %v338 = vpack.c.bf16 %v312, %v310
    %v339 = vpack.c.bf16 %v315, %v313
    %v340 = vpack.c.bf16 %v316, %v314
    %v341 = vpack.c.bf16 %v319, %v317
    %v342 = vpack.c.bf16 %v320, %v318
    %v343 = vpack.c.bf16 %v323, %v321
    %v344 = vpack.c.bf16 %v324, %v322
    %v345 = vpack.c.bf16 %v327, %v325
    %v346 = vpack.c.bf16 %v328, %v326
    %v347 = vpack.c.bf16 %v331, %v329
    %v348 = vpack.c.bf16 %v332, %v330
    %v350 = vlaneseq
    %v351 = vshrl.u32 %v350, 7
    %v352 = vsub.s32 0, %v351
    %v353 = vrot.slane %v78, %v352
    %v354 = vlaneseq
    %v355 = vshrl.u32 %v354, 7
    %v356 = vsub.s32 1, %v355
    %v357 = vrot.slane %v78, %v356
    %v392 = vunpack.c.l.b16 %v45
    %v393 = vunpack.c.h.b16 %v45
    %v394 = vunpack.c.l.b16 %v46
    %v395 = vunpack.c.h.b16 %v46
    %v396 = vunpack.c.l.b16 %v47
    %v397 = vunpack.c.h.b16 %v47
    %v398 = vunpack.c.l.b16 %v48
    %v399 = vunpack.c.h.b16 %v48
    %v400 = vunpack.c.l.b16 %v49
    %v401 = vunpack.c.h.b16 %v49
    %v402 = vunpack.c.l.b16 %v50
    %v403 = vunpack.c.h.b16 %v50
    %v404 = vunpack.c.l.b16 %v51
    %v405 = vunpack.c.h.b16 %v51
    %v406 = vunpack.c.l.b16 %v52
    %v407 = vunpack.c.h.b16 %v52
    %v408 = vunpack.c.l.b16 %v53
    %v409 = vunpack.c.h.b16 %v53
    %v410 = vunpack.c.l.b16 %v54
    %v411 = vunpack.c.h.b16 %v54
    %v412 = vunpack.c.l.b16 %v55
    %v413 = vunpack.c.h.b16 %v55
    %v414 = vunpack.c.l.b16 %v56
    %v415 = vunpack.c.h.b16 %v56
    %v416 = vunpack.c.l.b16 %v57
    %v417 = vunpack.c.h.b16 %v57
    %v418 = vunpack.c.l.b16 %v58
    %v419 = vunpack.c.h.b16 %v58
    %v420 = vunpack.c.l.b16 %v59
    %v421 = vunpack.c.h.b16 %v59
    %v422 = vunpack.c.l.b16 %v60
    %v423 = vunpack.c.h.b16 %v60
    %v424 = vunpack.c.l.b16 %v61
    %v425 = vunpack.c.h.b16 %v61
    %v426 = vunpack.c.l.b16 %v62
    %v427 = vunpack.c.h.b16 %v62
    %v428 = vunpack.c.l.b16 %v63
    %v429 = vunpack.c.h.b16 %v63
    %v430 = vunpack.c.l.b16 %v64
    %v431 = vunpack.c.h.b16 %v64
    %v432 = vunpack.c.l.b16 %v65
    %v433 = vunpack.c.h.b16 %v65
    %v434 = vunpack.c.l.b16 %v66
    %v435 = vunpack.c.h.b16 %v66
    %v436 = vunpack.c.l.b16 %v67
    %v437 = vunpack.c.h.b16 %v67
    %v438 = vunpack.c.l.b16 %v68
    %v439 = vunpack.c.h.b16 %v68
    %v440 = vunpack.c.l.b16 %v69
    %v441 = vunpack.c.h.b16 %v69
    %v442 = vunpack.c.l.b16 %v70
    %v443 = vunpack.c.h.b16 %v70
    %v444 = vunpack.c.l.b16 %v71
    %v445 = vunpack.c.h.b16 %v71
    %v446 = vunpack.c.l.b16 %v72
    %v447 = vunpack.c.h.b16 %v72
    %v448 = vunpack.c.l.b16 %v73
    %v449 = vunpack.c.h.b16 %v73
    %v450 = vunpack.c.l.b16 %v74
    %v451 = vunpack.c.h.b16 %v74
    %v452 = vunpack.c.l.b16 %v75
    %v453 = vunpack.c.h.b16 %v75
    %v454 = vunpack.c.l.b16 %v76
    %v455 = vunpack.c.h.b16 %v76
    %v456 = vpack.c.b16 %v394, %v392
    %v457 = vpack.c.b16 %v395, %v393
    %v458 = vpack.c.b16 %v398, %v396
    %v459 = vpack.c.b16 %v399, %v397
    %v460 = vpack.c.b16 %v402, %v400
    %v461 = vpack.c.b16 %v403, %v401
    %v462 = vpack.c.b16 %v406, %v404
    %v463 = vpack.c.b16 %v407, %v405
    %v464 = vpack.c.b16 %v410, %v408
    %v465 = vpack.c.b16 %v411, %v409
    %v466 = vpack.c.b16 %v414, %v412
    %v467 = vpack.c.b16 %v415, %v413
    %v468 = vpack.c.b16 %v418, %v416
    %v469 = vpack.c.b16 %v419, %v417
    %v470 = vpack.c.b16 %v422, %v420
    %v471 = vpack.c.b16 %v423, %v421
    %v472 = vpack.c.b16 %v426, %v424
    %v473 = vpack.c.b16 %v427, %v425
    %v474 = vpack.c.b16 %v430, %v428
    %v475 = vpack.c.b16 %v431, %v429
    %v476 = vpack.c.b16 %v434, %v432
    %v477 = vpack.c.b16 %v435, %v433
    %v478 = vpack.c.b16 %v438, %v436
    %v479 = vpack.c.b16 %v439, %v437
    %v480 = vpack.c.b16 %v442, %v440
    %v481 = vpack.c.b16 %v443, %v441
    %v482 = vpack.c.b16 %v446, %v444
    %v483 = vpack.c.b16 %v447, %v445
    %v484 = vpack.c.b16 %v450, %v448
    %v485 = vpack.c.b16 %v451, %v449
    %v486 = vpack.c.b16 %v454, %v452
    %v487 = vpack.c.b16 %v455, %v453
    %520 = vmatprep.subr.bf16.mxu0 %v471
    %521 = vmatpush1.bf16.msra.mxu0 %v470
    %522 = vmatprep.subr.bf16.mxu0 %v469
    %523 = vmatpush1.bf16.msra.mxu0 %v468
    %524 = vmatprep.subr.bf16.mxu0 %v467
    %525 = vmatpush1.bf16.msra.mxu0 %v466
    %526 = vmatprep.subr.bf16.mxu0 %v465
    %527 = vmatpush1.bf16.msra.mxu0 %v464
    %528 = vmatprep.subr.bf16.mxu0 %v463
    %529 = vmatpush1.bf16.msra.mxu0 %v462
    %530 = vmatprep.subr.bf16.mxu0 %v461
    %531 = vmatpush1.bf16.msra.mxu0 %v460
    %532 = vmatprep.subr.bf16.mxu0 %v459
    %533 = vmatpush1.bf16.msra.mxu0 %v458
    %534 = vmatprep.subr.bf16.mxu0 %v457
    %535 = vmatpush1.bf16.msra.mxu0 %v456
    %536 = vmatprep.subr.bf16.mxu0 %v487
    %537 = vmatpush2.bf16.msra.mxu0 %v486
    %538 = vmatprep.subr.bf16.mxu0 %v485
    %539 = vmatpush2.bf16.msra.mxu0 %v484
    %540 = vmatprep.subr.bf16.mxu0 %v483
    %541 = vmatpush2.bf16.msra.mxu0 %v482
    %542 = vmatprep.subr.bf16.mxu0 %v481
    %543 = vmatpush2.bf16.msra.mxu0 %v480
    %544 = vmatprep.subr.bf16.mxu0 %v479
    %545 = vmatpush2.bf16.msra.mxu0 %v478
    %546 = vmatprep.subr.bf16.mxu0 %v477
    %547 = vmatpush2.bf16.msra.mxu0 %v476
    %548 = vmatprep.subr.bf16.mxu0 %v475
    %549 = vmatpush2.bf16.msra.mxu0 %v474
    %550 = vmatprep.subr.bf16.mxu0 %v473
    %551 = vmatpush2.bf16.msra.mxu0 %v472
    %552 = vmatprep.mubr.bf16.mxu0 %v334
    %553 = vmatmul.mubr.bf16.gmra.mxu0 %v333
    %v554 = vpop.f32.mrf.mxu0
    %v555 = vadd.f32 %v353, %v554
    %v556 = vpop.f32.mrf.mxu0
    %v557 = vadd.f32 %v357, %v556
    %v558 = vpop.f32.mrf.mxu0
    %v559 = vadd.f32 %v353, %v558
    %v560 = vpop.f32.mrf.mxu0
    %v561 = vadd.f32 %v357, %v560
    %562 = vmatprep.mubr.bf16.mxu0 %v336
    %563 = vmatmul.mubr.bf16.gmra.mxu0 %v335
    %v564 = vpop.f32.mrf.mxu0
    %v565 = vadd.f32 %v353, %v564
    %v566 = vpop.f32.mrf.mxu0
    %v567 = vadd.f32 %v357, %v566
    %v568 = vpop.f32.mrf.mxu0
    %v569 = vadd.f32 %v353, %v568
    %v570 = vpop.f32.mrf.mxu0
    %v571 = vadd.f32 %v357, %v570
    %572 = vmatprep.mubr.bf16.mxu0 %v338
    %573 = vmatmul.mubr.bf16.gmra.mxu0 %v337
    %v574 = vpop.f32.mrf.mxu0
    %v575 = vadd.f32 %v353, %v574
    %v576 = vpop.f32.mrf.mxu0
    %v577 = vadd.f32 %v357, %v576
    %v578 = vpop.f32.mrf.mxu0
    %v579 = vadd.f32 %v353, %v578
    %v580 = vpop.f32.mrf.mxu0
    %v581 = vadd.f32 %v357, %v580
    %582 = vmatprep.mubr.bf16.mxu0 %v340
    %583 = vmatmul.mubr.bf16.gmra.mxu0 %v339
    %v584 = vpop.f32.mrf.mxu0
    %v585 = vadd.f32 %v353, %v584
    %v586 = vpop.f32.mrf.mxu0
    %v587 = vadd.f32 %v357, %v586
    %v588 = vpop.f32.mrf.mxu0
    %v589 = vadd.f32 %v353, %v588
    %v590 = vpop.f32.mrf.mxu0
    %v591 = vadd.f32 %v357, %v590
    %592 = vmatprep.mubr.bf16.mxu0 %v342
    %593 = vmatmul.mubr.bf16.gmra.mxu0 %v341
    %v594 = vpop.f32.mrf.mxu0
    %v595 = vadd.f32 %v353, %v594
    %v596 = vpop.f32.mrf.mxu0
    %v597 = vadd.f32 %v357, %v596
    %v598 = vpop.f32.mrf.mxu0
    %v599 = vadd.f32 %v353, %v598
    %v600 = vpop.f32.mrf.mxu0
    %v601 = vadd.f32 %v357, %v600
    %602 = vmatprep.mubr.bf16.mxu0 %v344
    %603 = vmatmul.mubr.bf16.gmra.mxu0 %v343
    %v604 = vpop.f32.mrf.mxu0
    %v605 = vadd.f32 %v353, %v604
    %v606 = vpop.f32.mrf.mxu0
    %v607 = vadd.f32 %v357, %v606
    %v608 = vpop.f32.mrf.mxu0
    %v609 = vadd.f32 %v353, %v608
    %v610 = vpop.f32.mrf.mxu0
    %v611 = vadd.f32 %v357, %v610
    %612 = vmatprep.mubr.bf16.mxu0 %v346
    %613 = vmatmul.mubr.bf16.gmra.mxu0 %v345
    %v614 = vpop.f32.mrf.mxu0
    %v615 = vadd.f32 %v353, %v614
    %v616 = vpop.f32.mrf.mxu0
    %v617 = vadd.f32 %v357, %v616
    %v618 = vpop.f32.mrf.mxu0
    %v619 = vadd.f32 %v353, %v618
    %v620 = vpop.f32.mrf.mxu0
    %v621 = vadd.f32 %v357, %v620
    %622 = vmatprep.mubr.bf16.mxu0 %v348
    %623 = vmatmul.mubr.bf16.gmra.mxu0 %v347
    %v624 = vpop.f32.mrf.mxu0
    %v625 = vadd.f32 %v353, %v624
    %v626 = vpop.f32.mrf.mxu0
    %v627 = vadd.f32 %v357, %v626
    %v628 = vpop.f32.mrf.mxu0
    %v629 = vadd.f32 %v353, %v628
    %v630 = vpop.f32.mrf.mxu0
    %v631 = vadd.f32 %v357, %v630
    %632 = vdwg.mxu0
    %v633 = vmax.f32 %v555, 0.0
    %v634 = vmax.f32 %v557, 0.0
    %v635 = vmax.f32 %v559, 0.0
    %v636 = vmax.f32 %v561, 0.0
    %v637 = vmax.f32 %v565, 0.0
    %v638 = vmax.f32 %v567, 0.0
    %v639 = vmax.f32 %v569, 0.0
    %v640 = vmax.f32 %v571, 0.0
    %v641 = vmax.f32 %v575, 0.0
    %v642 = vmax.f32 %v577, 0.0
    %v643 = vmax.f32 %v579, 0.0
    %v644 = vmax.f32 %v581, 0.0
    %v645 = vmax.f32 %v585, 0.0
    %v646 = vmax.f32 %v587, 0.0
    %v647 = vmax.f32 %v589, 0.0
    %v648 = vmax.f32 %v591, 0.0
    %v649 = vmax.f32 %v595, 0.0
    %v650 = vmax.f32 %v597, 0.0
    %v651 = vmax.f32 %v599, 0.0
    %v652 = vmax.f32 %v601, 0.0
    %v653 = vmax.f32 %v605, 0.0
    %v654 = vmax.f32 %v607, 0.0
    %v655 = vmax.f32 %v609, 0.0
    %v656 = vmax.f32 %v611, 0.0
    %v657 = vmax.f32 %v615, 0.0
    %v658 = vmax.f32 %v617, 0.0
    %v659 = vmax.f32 %v619, 0.0
    %v660 = vmax.f32 %v621, 0.0
    %v661 = vmax.f32 %v625, 0.0
    %v662 = vmax.f32 %v627, 0.0
    %v663 = vmax.f32 %v629, 0.0
    %v664 = vmax.f32 %v631, 0.0
    %v666 = vlaneseq
    %v667 = vshrl.u32 %v666, 7
    %v668 = vsub.s32 0, %v667
    %v669 = vrot.slane %v79, %v668
    %v670 = vlaneseq
    %v671 = vshrl.u32 %v670, 7
    %v672 = vsub.s32 1, %v671
    %v673 = vrot.slane %v79, %v672
    %v676 = vmul.f32 %v633, %v669
    %v677 = vmul.f32 %v634, %v673
    %v678 = vmul.f32 %v635, %v669
    %v679 = vmul.f32 %v636, %v673
    %v680 = vmul.f32 %v637, %v669
    %v681 = vmul.f32 %v638, %v673
    %v682 = vmul.f32 %v639, %v669
    %v683 = vmul.f32 %v640, %v673
    %v684 = vmul.f32 %v641, %v669
    %v685 = vmul.f32 %v642, %v673
    %v686 = vmul.f32 %v643, %v669
    %v687 = vmul.f32 %v644, %v673
    %v688 = vmul.f32 %v645, %v669
    %v689 = vmul.f32 %v646, %v673
    %v690 = vmul.f32 %v647, %v669
    %v691 = vmul.f32 %v648, %v673
    %v692 = vmul.f32 %v649, %v669
    %v693 = vmul.f32 %v650, %v673
    %v694 = vmul.f32 %v651, %v669
    %v695 = vmul.f32 %v652, %v673
    %v696 = vmul.f32 %v653, %v669
    %v697 = vmul.f32 %v654, %v673
    %v698 = vmul.f32 %v655, %v669
    %v699 = vmul.f32 %v656, %v673
    %v700 = vmul.f32 %v657, %v669
    %v701 = vmul.f32 %v658, %v673
    %v702 = vmul.f32 %v659, %v669
    %v703 = vmul.f32 %v660, %v673
    %v704 = vmul.f32 %v661, %v669
    %v705 = vmul.f32 %v662, %v673
    %v706 = vmul.f32 %v663, %v669
    %v707 = vmul.f32 %v664, %v673
    %v708 = vadd.f32 %v676, %v677
    %709 = vadd.xlane.f32.xlu0 %v708
    %v710 = vpop.xlane.xlu0 %709
    %v711 = vadd.f32 %v678, %v679
    %712 = vadd.xlane.f32.xlu0 %v711
    %v713 = vpop.xlane.xlu0 %712
    %v714 = vadd.f32 %v680, %v681
    %715 = vadd.xlane.f32.xlu0 %v714
    %v716 = vpop.xlane.xlu0 %715
    %v717 = vadd.f32 %v682, %v683
    %718 = vadd.xlane.f32.xlu0 %v717
    %v719 = vpop.xlane.xlu0 %718
    %v720 = vadd.f32 %v684, %v685
    %721 = vadd.xlane.f32.xlu0 %v720
    %v722 = vpop.xlane.xlu0 %721
    %v723 = vadd.f32 %v686, %v687
    %724 = vadd.xlane.f32.xlu0 %v723
    %v725 = vpop.xlane.xlu0 %724
    %v726 = vadd.f32 %v688, %v689
    %727 = vadd.xlane.f32.xlu0 %v726
    %v728 = vpop.xlane.xlu0 %727
    %v729 = vadd.f32 %v690, %v691
    %730 = vadd.xlane.f32.xlu0 %v729
    %v731 = vpop.xlane.xlu0 %730
    %v732 = vadd.f32 %v692, %v693
    %733 = vadd.xlane.f32.xlu0 %v732
    %v734 = vpop.xlane.xlu0 %733
    %v735 = vadd.f32 %v694, %v695
    %736 = vadd.xlane.f32.xlu0 %v735
    %v737 = vpop.xlane.xlu0 %736
    %v738 = vadd.f32 %v696, %v697
    %739 = vadd.xlane.f32.xlu0 %v738
    %v740 = vpop.xlane.xlu0 %739
    %v741 = vadd.f32 %v698, %v699
    %742 = vadd.xlane.f32.xlu0 %v741
    %v743 = vpop.xlane.xlu0 %742
    %v744 = vadd.f32 %v700, %v701
    %745 = vadd.xlane.f32.xlu0 %v744
    %v746 = vpop.xlane.xlu0 %745
    %v747 = vadd.f32 %v702, %v703
    %748 = vadd.xlane.f32.xlu0 %v747
    %v749 = vpop.xlane.xlu0 %748
    %v750 = vadd.f32 %v704, %v705
    %751 = vadd.xlane.f32.xlu0 %v750
    %v752 = vpop.xlane.xlu0 %751
    %v753 = vadd.f32 %v706, %v707
    %754 = vadd.xlane.f32.xlu0 %v753
    %v755 = vpop.xlane.xlu0 %754
    %v756 = vstv %s80
    %v757 = vadd.f32 %v710, %v756
    %v758 = vadd.f32 %v713, %v756
    %v759 = vadd.f32 %v716, %v756
    %v760 = vadd.f32 %v719, %v756
    %v761 = vadd.f32 %v722, %v756
    %v762 = vadd.f32 %v725, %v756
    %v763 = vadd.f32 %v728, %v756
    %v764 = vadd.f32 %v731, %v756
    %v765 = vadd.f32 %v734, %v756
    %v766 = vadd.f32 %v737, %v756
    %v767 = vadd.f32 %v740, %v756
    %v768 = vadd.f32 %v743, %v756
    %v769 = vadd.f32 %v746, %v756
    %v770 = vadd.f32 %v749, %v756
    %v771 = vadd.f32 %v752, %v756
    %v772 = vadd.f32 %v755, %v756
    %v789 = vlaneseq
    %v790 = vand.u32 %v789, 127
    %v791 = vlaneseq
    %v792 = vshrl.u32 %v791, 7
    %v793 = vsub.s32 %v790, %v792
    %v794 = vrot.slane %v757, %v793
    %v795 = vadd.s32 %v790, 4294967288
    %v796 = vlaneseq
    %v797 = vshrl.u32 %v796, 7
    %v798 = vsub.s32 %v795, %v797
    %v799 = vrot.slane %v758, %v798
    %vm800 = vcmask 130112
    %v801 = vsel %vm800, %v799, %v794
    %v802 = vadd.s32 %v790, 4294967280
    %v803 = vlaneseq
    %v804 = vshrl.u32 %v803, 7
    %v805 = vsub.s32 %v802, %v804
    %v806 = vrot.slane %v759, %v805
    %vm807 = vcmask 195712
    %v808 = vsel %vm807, %v806, %v801
    %v809 = vadd.s32 %v790, 4294967272
    %v810 = vlaneseq
    %v811 = vshrl.u32 %v810, 7
    %v812 = vsub.s32 %v809, %v811
    %v813 = vrot.slane %v760, %v812
    %vm814 = vcmask 261312
    %v815 = vsel %vm814, %v813, %v808
    %v816 = vadd.s32 %v790, 4294967264
    %v817 = vlaneseq
    %v818 = vshrl.u32 %v817, 7
    %v819 = vsub.s32 %v816, %v818
    %v820 = vrot.slane %v761, %v819
    %vm821 = vcmask 326912
    %v822 = vsel %vm821, %v820, %v815
    %v823 = vadd.s32 %v790, 4294967256
    %v824 = vlaneseq
    %v825 = vshrl.u32 %v824, 7
    %v826 = vsub.s32 %v823, %v825
    %v827 = vrot.slane %v762, %v826
    %vm828 = vcmask 392512
    %v829 = vsel %vm828, %v827, %v822
    %v830 = vadd.s32 %v790, 4294967248
    %v831 = vlaneseq
    %v832 = vshrl.u32 %v831, 7
    %v833 = vsub.s32 %v830, %v832
    %v834 = vrot.slane %v763, %v833
    %vm835 = vcmask 458112
    %v836 = vsel %vm835, %v834, %v829
    %v837 = vadd.s32 %v790, 4294967240
    %v838 = vlaneseq
    %v839 = vshrl.u32 %v838, 7
    %v840 = vsub.s32 %v837, %v839
    %v841 = vrot.slane %v764, %v840
    %vm842 = vcmask 523712
    %v843 = vsel %vm842, %v841, %v836
    %v844 = vadd.s32 %v790, 4294967232
    %v845 = vlaneseq
    %v846 = vshrl.u32 %v845, 7
    %v847 = vsub.s32 %v844, %v846
    %v848 = vrot.slane %v765, %v847
    %vm849 = vcmask 589312
    %v850 = vsel %vm849, %v848, %v843
    %v851 = vadd.s32 %v790, 4294967224
    %v852 = vlaneseq
    %v853 = vshrl.u32 %v852, 7
    %v854 = vsub.s32 %v851, %v853
    %v855 = vrot.slane %v766, %v854
    %vm856 = vcmask 654912
    %v857 = vsel %vm856, %v855, %v850
    %v858 = vadd.s32 %v790, 4294967216
    %v859 = vlaneseq
    %v860 = vshrl.u32 %v859, 7
    %v861 = vsub.s32 %v858, %v860
    %v862 = vrot.slane %v767, %v861
    %vm863 = vcmask 720512
    %v864 = vsel %vm863, %v862, %v857
    %v865 = vadd.s32 %v790, 4294967208
    %v866 = vlaneseq
    %v867 = vshrl.u32 %v866, 7
    %v868 = vsub.s32 %v865, %v867
    %v869 = vrot.slane %v768, %v868
    %vm870 = vcmask 786112
    %v871 = vsel %vm870, %v869, %v864
    %v872 = vadd.s32 %v790, 4294967200
    %v873 = vlaneseq
    %v874 = vshrl.u32 %v873, 7
    %v875 = vsub.s32 %v872, %v874
    %v876 = vrot.slane %v769, %v875
    %vm877 = vcmask 851712
    %v878 = vsel %vm877, %v876, %v871
    %v879 = vadd.s32 %v790, 4294967192
    %v880 = vlaneseq
    %v881 = vshrl.u32 %v880, 7
    %v882 = vsub.s32 %v879, %v881
    %v883 = vrot.slane %v770, %v882
    %vm884 = vcmask 917312
    %v885 = vsel %vm884, %v883, %v878
    %v886 = vadd.s32 %v790, 4294967184
    %v887 = vlaneseq
    %v888 = vshrl.u32 %v887, 7
    %v889 = vsub.s32 %v886, %v888
    %v890 = vrot.slane %v771, %v889
    %vm891 = vcmask 982912
    %v892 = vsel %vm891, %v890, %v885
    %v893 = vadd.s32 %v790, 4294967176
    %v894 = vlaneseq
    %v895 = vshrl.u32 %v894, 7
    %v896 = vsub.s32 %v893, %v895
    %v897 = vrot.slane %v772, %v896
    %vm898 = vcmask 1048512
    %v899 = vsel %vm898, %v897, %v892
    %901 = vst [vmem:[#allocation6] sm:$0x1] %v899
    // Predicated region
    $region34: #{tpu_custom_call.1} parent=1 // pred_check
      _
    $region35: #{tpu_custom_call.1} parent=1 // pred_check_branch
      %903 = sbr.rel (0) target = $region37
    $region36: #{tpu_custom_call.1} parent=1 // pred_region
      %s905 = ssub.s32 16, 16
      %906 = vsyncadd [#allocation5], %s905
      %s908 = sshll.u32 [#allocation6], 4
      %s909 = int_to_ptr.vmem [resolvable:$true] %s908
      %911 = dma.vmem_to_hbm [thread:$0]  %s909, 16, %s7, [#allocation5]
    $region37: #{tpu_custom_call.1} parent=1 // pred_fallthru
      _
    // Predicated region
    $region38: #{tpu_custom_call.1} parent=1 // pred_check
      _
    $region39: #{tpu_custom_call.1} parent=1 // pred_check_branch
      %913 = sbr.rel (0) target = $region41
    $region40: #{tpu_custom_call.1} parent=1 // pred_region
      %914 = dma.done [#allocation5], 16
    $region41: #{tpu_custom_call.1} parent=1 // pred_fallthru
      _
    %915 = vsyncpa [#allocation4], 1
    %916 = vsyncpa [#allocation5], 1

</llo_original>
